<compile_context>
chip_gen: v7x
topology: tpu7x:2x2x1
jax: 0.10.0
libtpu: 0.0.40
codegen_flags: <defaults>
</compile_context>

<pallas_src>
import functools

import jax
import jax.numpy as jnp
from jax.experimental import pallas as pl
from jax.experimental.pallas import tpu as pltpu


def _pqe_kernel(alpha_sum_ref, u_ref, v_ref, gsum_ref, alphat_ref, out_ref):
    # u_ref / v_ref: (bbp, Dp) packed latent tiles.  Compute dtype follows gsum_ref's dtype:
    # bf16 inputs stay bf16 through the relu + MXU matmul; anything else is widened to f32.
    cdt = gsum_ref.dtype
    u = u_ref[...].astype(cdt)
    v = v_ref[...].astype(cdt)

    # HalfLineShape + LebesgueMeasure: measure(A(u) \ A(v)) = relu(u - v) * scale.
    # The per-process scale is folded into the group-sum matrix, so only the relu happens here (VPU).
    t = jnp.maximum(u - v, 0.0)                                            # (bbp, Dp)

    # Sum the P Poisson processes of each quasipartition (scaled group-sum on the MXU, lane-dense),
    # always accumulating in f32.
    s = jnp.dot(t, gsum_ref[...], preferred_element_type=jnp.float32)      # (bbp, R*M)

    # E[pi] = 1 - exp(-s); DistanceAggregator d = sum_m alpha_m * E[pi_m], rewritten as
    #   d = sum(alpha) - alpha . exp(-s)
    # which drops the elementwise "1 - x" pass and keeps the tiny NT matmul producing a transposed
    # (R, bbp) tile -> lane-dense (unmasked) output stores.
    ep = jnp.exp(-s)                                                       # (bbp, R*M), EUP
    out_ref[...] = alpha_sum_ref[0] - jax.lax.dot_general(
        alphat_ref[...], ep,
        dimension_numbers=(((1,), (1,)), ((), ())),
        preferred_element_type=jnp.float32)                                # (R, bbp)
    # TODO(synk): discounted=True (DiscountedDistanceAggregator, product form) and the gaussian
    # measure/shape variants are not part of the default PQE-LH config and not implemented here.


def _round_up(x, m):
    return -(-x // m) * m


def pqe_forward(u, v, scale, alpha, *, num_mixtures, num_processes, batch_block=8192):
    """PQE-LH forward.  u, v: (B, M*P) float.  scale: (M, P) > 0.  alpha: (M,) >= 0.
    Returns (B,) float32 quasimetric distances d(u -> v)."""
    B, D = u.shape
    M, P = num_mixtures, num_processes
    assert D == M * P and v.shape == (B, D)

    # ---- lane packing ---------------------------------------------------------------------------
    # Pack R consecutive batch rows into one 128-wide lane row via a free contiguous reshape.  Only
    # when R divides B exactly — otherwise fall back to R=1 so we never jnp.pad (full HBM copy).
    R_max = 128 // D if (D < 128 and 128 % D == 0) else 1
    R = R_max if (R_max > 1 and B % R_max == 0) else 1
    Dp = R * D
    Bp_raw = B // R                                      # packed rows actually present
    u_p = u.reshape(Bp_raw, Dp)
    v_p = v.reshape(Bp_raw, Dp)

    # ---- tile sizing ------------------------------------------------------------------------------
    in_itemsize = jnp.dtype(u.dtype).itemsize
    # Per packed row of VMEM: 2 inputs x 2 pipeline buffers (lane-padded to 128) + ~3 f32 temporaries.
    per_row_bytes = 2 * 2 * 128 * in_itemsize + 3 * 128 * 4
    vmem_budget = 24 * 1024 * 1024                       # safe inside every chip's scoped VMEM
    bbp_cap = max(128, (vmem_budget // per_row_bytes) // 128 * 128)
    bbp_desired = min(max(8, batch_block // R), bbp_cap)

    min_split = 512                                      # packed rows that amortize ~0.35us/step
    if Bp_raw <= bbp_desired:
        if Bp_raw >= 2 * min_split:
            num_tiles = 2                                # keep both v7x TensorCores busy
            bbp = _round_up(-(-Bp_raw // 2), 128)
        else:
            num_tiles = 1
            bbp = Bp_raw                                 # exact fit: block == full array, no padding
    else:
        bbp = _round_up(bbp_desired, 128)
        num_tiles = -(-Bp_raw // bbp)
    Bp_alloc = num_tiles * bbp
    # Ragged last block: Pallas clips the input DMA to the in-bounds rows; stale tail rows produce
    # garbage outputs that are sliced off below (rows are independent, so this is safe).

    # ---- folded parameters ------------------------------------------------------------------------
    cdt = jnp.bfloat16 if u.dtype == jnp.bfloat16 else jnp.float32
    # Group-sum matrix with the Lebesgue scales folded in, block-diagonal over the R packed slots:
    #   gsum[r*D + m*P + p, r*M + m] = scale[m, p]
    g = jnp.repeat(jnp.eye(M, dtype=jnp.float32), P, axis=0) * scale.reshape(D, 1).astype(jnp.float32)
    gsum = jnp.kron(jnp.eye(R, dtype=jnp.float32), g).astype(cdt)                      # (Dp, R*M)
    # Mixture weights, tiled per packed slot, stored transposed for the NT aggregation matmul.
    alphat = jnp.kron(jnp.eye(R, dtype=jnp.float32),
                      alpha.reshape(1, M).astype(jnp.float32))                         # (R, R*M)
    alpha_sum = jnp.sum(alpha.astype(jnp.float32)).reshape(1)                          # SMEM scalar

    cost = pl.CostEstimate(
        flops=int(2 * B * D + 2 * Bp_raw * Dp * R * M + 2 * Bp_raw * R * M * R),
        transcendentals=int(Bp_raw * R * M),
        bytes_accessed=int(2 * B * D * in_itemsize + R * Bp_alloc * 4
                           + Dp * R * M * jnp.dtype(cdt).itemsize + R * R * M * 4 + 4),
    )

    out = pl.pallas_call(
        _pqe_kernel,
        out_shape=jax.ShapeDtypeStruct((R, Bp_alloc), jnp.float32),
        grid=(num_tiles,),
        in_specs=[
            pl.BlockSpec(memory_space=pltpu.MemorySpace.SMEM),   # sum(alpha) scalar
            pl.BlockSpec((bbp, Dp), lambda i: (i, 0)),           # packed u tile
            pl.BlockSpec((bbp, Dp), lambda i: (i, 0)),           # packed v tile
            pl.BlockSpec((Dp, R * M), lambda i: (0, 0)),         # scaled group-sum matrix (broadcast)
            pl.BlockSpec((R, R * M), lambda i: (0, 0)),          # tiled mixture weights (broadcast)
        ],
        out_specs=pl.BlockSpec((R, bbp), lambda i: (0, i)),      # lane-dense output tile
        compiler_params=pltpu.CompilerParams(
            dimension_semantics=("parallel",),
            vmem_limit_bytes=32 * 1024 * 1024,
        ),
        cost_estimate=cost,
        # NOTE: pipeline_mode=pl.Buffered(3) on the u/v specs is worth sweeping only if a trace shows
        # exposed DMA at step boundaries; default double-buffering kept here.
    )(alpha_sum, u_p, v_p, gsum, alphat)

    # out[r, p] = distance of original row p*R + r  ->  un-pack and drop the ragged tail.
    return out.T.reshape(-1)[:B]


def pqe_reference(u, v, scale, alpha, M, P):
    """Plain-JAX reference of the PQE-LH forward for correctness checking."""
    u3 = u.astype(jnp.float32).reshape(u.shape[0], M, P)
    v3 = v.astype(jnp.float32).reshape(v.shape[0], M, P)
    t = jnp.maximum(u3 - v3, 0.0) * scale[None]            # (B, M, P)
    e = 1.0 - jnp.exp(-t.sum(-1))                          # (B, M)
    return (e * alpha[None]).sum(-1)                       # (B,)


if __name__ == "__main__":
    # Default PQE-LH config: num_quasipartition_mixtures=16, processes=4 -> latent_dim=64.
    M, P = 16, 4
    D = M * P

    key = jax.random.PRNGKey(0)
    ku, kv, ka = jax.random.split(key, 3)

    # Deterministic synthetic parameters (no checkpoint load):
    #  - LebesgueMeasure per-process scales, initialized to 1.
    #  - DistanceAggregator nonnegative mixture weights via softplus of a small deterministic raw param.
    scale = jnp.ones((M, P), dtype=jnp.float32)
    alpha = jax.nn.softplus(0.1 * jax.random.normal(ka, (M,), dtype=jnp.float32)) / M

    fwd = functools.partial(pqe_forward, scale=scale, alpha=alpha,
                            num_mixtures=M, num_processes=P)

    def check(B, dtype=jnp.float32, atol=1e-5, rtol=1e-5, **kw):
        kub, kvb = jax.random.split(jax.random.fold_in(key, B), 2)
        uu = jax.random.normal(kub, (B, D), dtype=jnp.float32)
        vv = jax.random.normal(kvb, (B, D), dtype=jnp.float32)
        d = jax.block_until_ready(fwd(uu.astype(dtype), vv.astype(dtype), **kw))
        ref = pqe_reference(uu, vv, scale, alpha, M, P)
        assert d.shape == (B,)
        assert jnp.allclose(d, ref, atol=atol, rtol=rtol), (B, str(dtype))
        assert bool(jnp.all(d >= 0.0))
        return uu, vv

    # B=5: the docstring example; ragged batch -> R=1 fallback, single exact-fit tile.
    u, v = check(5)
    d_vu = jax.block_until_ready(fwd(v, u))
    d_uu = jax.block_until_ready(fwd(u, u))
    assert jnp.allclose(d_vu, pqe_reference(v, u, scale, alpha, M, P), atol=1e-5, rtol=1e-5)
    assert jnp.allclose(d_uu, jnp.zeros((5,), jnp.float32), atol=1e-6)   # quasimetric: d(u,u)=0

    # B=6: even batch -> R=2 lane packing, single exact-fit tile.
    check(6)
    # B=2050: lane-packed + 2-way tile split (feeds both v7x TensorCores) with a ragged last block.
    check(2050)
    # Small batch_block override exercises the general multi-tile grid path (ragged last tile).
    check(2050, batch_block=512)
    # bf16 inputs: relu + group-sum matmul stay in bf16 (f32 accumulation); looser tolerance.
    check(6, dtype=jnp.bfloat16, atol=2e-2, rtol=2e-2)

    print("KERNEL_OK")
</pallas_src>

<mosaic_0001>
module attributes {stable_mosaic.version = 11 : i64} {
  func.func @_pqe_kernel(%arg0: i32, %arg1: memref<1xf32, #tpu.memory_space<smem>>, %arg2: memref<5x64xf32, #tpu.memory_space<vmem>>, %arg3: memref<5x64xf32, #tpu.memory_space<vmem>>, %arg4: memref<64x16xf32, #tpu.memory_space<vmem>>, %arg5: memref<1x16xf32, #tpu.memory_space<vmem>>, %arg6: memref<1x5xf32, #tpu.memory_space<vmem>>) attributes {dimension_semantics = [#tpu.dimension_semantics<parallel>], iteration_bounds = array<i64: 1>, scalar_prefetch = 0 : i64, scratch_operands = 0 : i64, tpu.core_type = #tpu.core_type<tc>, window_params = [{transform_indices = @transform_0, window_bounds = array<i64: 1>}, {transform_indices = @transform_1, window_bounds = array<i64: 5, 64>}, {transform_indices = @transform_2, window_bounds = array<i64: 5, 64>}, {pipeline_mode = #tpu.pipeline_mode<synchronous>, transform_indices = @transform_3, window_bounds = array<i64: 64, 16>}, {pipeline_mode = #tpu.pipeline_mode<synchronous>, transform_indices = @transform_4, window_bounds = array<i64: 1, 16>}, {transform_indices = @transform_5, window_bounds = array<i64: 1, 5>}]} {
    %c0 = arith.constant 0 : index
    %c0_0 = arith.constant 0 : index
    %0 = vector.load %arg2[%c0, %c0_0] : memref<5x64xf32, #tpu.memory_space<vmem>>, vector<5x64xf32>
    %c0_1 = arith.constant 0 : index
    %c0_2 = arith.constant 0 : index
    %1 = vector.load %arg3[%c0_1, %c0_2] : memref<5x64xf32, #tpu.memory_space<vmem>>, vector<5x64xf32>
    %2 = arith.subf %0, %1 : vector<5x64xf32>
    %cst = arith.constant 0.000000e+00 : f32
    %3 = vector.broadcast %cst : f32 to vector<5x64xf32>
    %4 = arith.maximumf %2, %3 : vector<5x64xf32>
    %c0_3 = arith.constant 0 : index
    %c0_4 = arith.constant 0 : index
    %5 = vector.load %arg4[%c0_3, %c0_4] : memref<64x16xf32, #tpu.memory_space<vmem>>, vector<64x16xf32>
    %cst_5 = arith.constant dense<0.000000e+00> : vector<5x16xf32>
    %6 = tpu.matmul %4, %5, %cst_5 {dimension_numbers = #tpu.dot_dimension_numbers<[1], [0], [0], [1], [0, 0, 1, 1], [], []>} : vector<5x64xf32>, vector<64x16xf32>, vector<5x16xf32> -> vector<5x16xf32>
    %cst_6 = arith.constant 0.000000e+00 : f32
    %7 = vector.broadcast %cst_6 : f32 to vector<5x16xf32>
    %8 = arith.subf %7, %6 : vector<5x16xf32>
    %9 = math.exp %8 : vector<5x16xf32>
    %c0_7 = arith.constant 0 : index
    %10 = memref.load %arg1[%c0_7] : memref<1xf32, #tpu.memory_space<smem>>
    %c0_8 = arith.constant 0 : index
    %c0_9 = arith.constant 0 : index
    %11 = vector.load %arg5[%c0_8, %c0_9] : memref<1x16xf32, #tpu.memory_space<vmem>>, vector<1x16xf32>
    %cst_10 = arith.constant dense<0.000000e+00> : vector<1x5xf32>
    %12 = tpu.matmul %11, %9, %cst_10 {dimension_numbers = #tpu.dot_dimension_numbers<[1], [1], [0], [0], [0, 0, 1, 0], [], []>} : vector<1x16xf32>, vector<5x16xf32>, vector<1x5xf32> -> vector<1x5xf32>
    %13 = vector.broadcast %10 : f32 to vector<1x5xf32>
    %14 = arith.subf %13, %12 : vector<1x5xf32>
    %c0_11 = arith.constant 0 : index
    %c0_12 = arith.constant 0 : index
    %15 = vector.load %arg6[%c0_11, %c0_12] : memref<1x5xf32, #tpu.memory_space<vmem>>, vector<1x5xf32>
    tpu.vector_store %arg6[%c0_11, %c0_12], %14 {strides = array<i32>} : memref<1x5xf32, #tpu.memory_space<vmem>>, vector<1x5xf32>,
    return
  }
  func.func @transform_0(%arg0: i32) -> i32 {
    %c0_i32 = arith.constant 0 : i32
    %c0_i32_0 = arith.constant 0 : i32
    return %c0_i32 : i32
  }
  func.func @transform_1(%arg0: i32) -> (i32, i32) {
    %c0_i32 = arith.constant 0 : i32
    %c0_i32_0 = arith.constant 0 : i32
    return %arg0, %c0_i32 : i32, i32
  }
  func.func @transform_2(%arg0: i32) -> (i32, i32) {
    %c0_i32 = arith.constant 0 : i32
    %c0_i32_0 = arith.constant 0 : i32
    return %arg0, %c0_i32 : i32, i32
  }
  func.func @transform_3(%arg0: i32) -> (i32, i32) {
    %c0_i32 = arith.constant 0 : i32
    %c0_i32_0 = arith.constant 0 : i32
    %c0_i32_1 = arith.constant 0 : i32
    return %c0_i32, %c0_i32_0 : i32, i32
  }
  func.func @transform_4(%arg0: i32) -> (i32, i32) {
    %c0_i32 = arith.constant 0 : i32
    %c0_i32_0 = arith.constant 0 : i32
    %c0_i32_1 = arith.constant 0 : i32
    return %c0_i32, %c0_i32_0 : i32, i32
  }
  func.func @transform_5(%arg0: i32) -> (i32, i32) {
    %c0_i32 = arith.constant 0 : i32
    %c0_i32_0 = arith.constant 0 : i32
    return %c0_i32, %arg0 : i32, i32
  }
}

</mosaic_0001>

<llo_original>
// kernel: tpu_custom_call.1
$region0: #{tpu_custom_call.1}
  #allocation0 [shape = 'u32[]', space=smem, size = 0x4, offset = 0x4, fixed_abs, tag = 'smem constant byte address 0x4 - core index']
  #allocation1 [shape = 'u32[144,128]{1,0:T(1,128)}', space=vmem, size = 0x12000, scoped, tag = 'internal scratch']
  #allocation2 [shape = 'f32[1]{0:T(128)S(6)}', space=smem, size = 0x200, scoped, tag = 'scoped memory for tpu_custom_call.1']
  %s0 = inlined_call_operand.<no memory space> [shape: f32[1], index: 0, kind: input, shape index: {}]
  %s1 = inlined_call_operand.vmem [shape: f32[5,64], index: 1, kind: input, shape index: {}]
  %s2 = inlined_call_operand.vmem [shape: f32[5,64], index: 2, kind: input, shape index: {}]
  %s3 = inlined_call_operand.vmem [shape: f32[64,16], index: 3, kind: input, shape index: {}]
  %s4 = inlined_call_operand.vmem [shape: f32[1,16], index: 4, kind: input, shape index: {}]
  %s5 = inlined_call_operand.hbm [shape: f32[1,5], index: 5, kind: output, shape index: {}]
  %s6 = sld [smem:[#allocation0]]
  $region30: #{tpu_custom_call.1} parent=0
    _
  %s8 = ssub.s32 1, %s6
  %s9 = scalar_select 0, %s8, %s6
  %10 = sst [smem:[#allocation2]] %s0
  $region1: #{tpu_custom_call.1} parent=0
    #allocation3 [shape = 'u8[512]{0}', space=vmem, size = 0x400, scoped, tag = 'output window, operand 0, single buffered']
    #allocation4 [shape = 's32[1]{0}', space=sflag, size = 0x4, scoped, tag = 'scoped memory for tpu_custom_call.1']
    %11 = vsyncpa [#allocation4], 0
    // Predicated region
    $region2: #{tpu_custom_call.1} parent=1 // pred_check
      _
    $region3: #{tpu_custom_call.1} parent=1 // pred_check_branch
      %13 = sbr.rel (0) target = $region5
    $region4: #{tpu_custom_call.1} parent=1 // pred_region
      _
    $region5: #{tpu_custom_call.1} parent=1 // pred_fallthru
      _
    // Predicated region
    $region6: #{tpu_custom_call.1} parent=1 // pred_check
      _
    $region7: #{tpu_custom_call.1} parent=1 // pred_check_branch
      %15 = sbr.rel (0) target = $region9
    $region8: #{tpu_custom_call.1} parent=1 // pred_region
      _
    $region9: #{tpu_custom_call.1} parent=1 // pred_fallthru
      _
    // Predicated region
    $region10: #{tpu_custom_call.1} parent=1 // pred_check
      _
    $region11: #{tpu_custom_call.1} parent=1 // pred_check_branch
      %17 = sbr.rel (0) target = $region13
    $region12: #{tpu_custom_call.1} parent=1 // pred_region
      _
    $region13: #{tpu_custom_call.1} parent=1 // pred_fallthru
      _
    // Predicated region
    $region14: #{tpu_custom_call.1} parent=1 // pred_check
      _
    $region15: #{tpu_custom_call.1} parent=1 // pred_check_branch
      %19 = sbr.rel (0) target = $region17
    $region16: #{tpu_custom_call.1} parent=1 // pred_region
      _
    $region17: #{tpu_custom_call.1} parent=1 // pred_fallthru
      _
    // Predicated region
    $region18: #{tpu_custom_call.1} parent=1 // pred_check
      _
    $region19: #{tpu_custom_call.1} parent=1 // pred_check_branch
      %21 = sbr.rel (0) target = $region21
    $region20: #{tpu_custom_call.1} parent=1 // pred_region
      _
    $region21: #{tpu_custom_call.1} parent=1 // pred_fallthru
      _
    %v22 = vld [vmem:[%s1] sm:$0x1f]
    %v23 = vld [vmem:[%s2] sm:$0x1f]
    %v24 = vsub.f32 %v22, %v23
    %v25 = vmax.f32 %v24, 0.0
    %v26 = vld [vmem:[%s3] sm:$0xff]
    %v27 = vld [vmem:[%s3 + $0x8] sm:$0xff]
    %v28 = vld [vmem:[%s3 + $0x10] sm:$0xff]
    %v29 = vld [vmem:[%s3 + $0x18] sm:$0xff]
    %v30 = vld [vmem:[%s3 + $0x20] sm:$0xff]
    %v31 = vld [vmem:[%s3 + $0x28] sm:$0xff]
    %v32 = vld [vmem:[%s3 + $0x30] sm:$0xff]
    %v33 = vld [vmem:[%s3 + $0x38] sm:$0xff]
    %vm34 = vcmask 523264
    %v36 = vsel %vm34, %v25, 0
    %38 = vmatprep.subr.mxu0 0.0
    %39 = vmatpush1.msra.mxu0 %v26
    %40 = vmatprep.subr.mxu0 0.0
    %41 = vmatpush1.msra.mxu0 %v27
    %42 = vmatprep.subr.mxu0 0.0
    %43 = vmatpush1.msra.mxu0 %v28
    %44 = vmatprep.subr.mxu0 0.0
    %45 = vmatpush1.msra.mxu0 %v29
    %46 = vmatprep.subr.mxu0 0.0
    %47 = vmatpush1.msra.mxu0 %v30
    %48 = vmatprep.subr.mxu0 0.0
    %49 = vmatpush1.msra.mxu0 %v31
    %50 = vmatprep.subr.mxu0 0.0
    %51 = vmatpush1.msra.mxu0 %v32
    %52 = vmatprep.subr.mxu0 0.0
    %53 = vmatpush1.msra.mxu0 %v33
    %54 = vmatprep.subr.mxu0 0.0
    %55 = vmatpush1.msra.mxu0 0.0
    %56 = vmatprep.subr.mxu0 0.0
    %57 = vmatpush1.msra.mxu0 0.0
    %58 = vmatprep.subr.mxu0 0.0
    %59 = vmatpush1.msra.mxu0 0.0
    %60 = vmatprep.subr.mxu0 0.0
    %61 = vmatpush1.msra.mxu0 0.0
    %62 = vmatprep.subr.mxu0 0.0
    %63 = vmatpush1.msra.mxu0 0.0
    %64 = vmatprep.subr.mxu0 0.0
    %65 = vmatpush1.msra.mxu0 0.0
    %66 = vmatprep.subr.mxu0 0.0
    %67 = vmatpush1.msra.mxu0 0.0
    %68 = vmatprep.subr.mxu0 0.0
    %69 = vmatpush1.msra.mxu0 0.0
    %70 = vmatprep.subr.mxu0 0.0
    %71 = vmatpush1.msra.mxu0 0.0
    %72 = vmatprep.subr.mxu0 0.0
    %73 = vmatpush1.msra.mxu0 0.0
    %74 = vmatprep.subr.mxu0 0.0
    %75 = vmatpush1.msra.mxu0 0.0
    %76 = vmatprep.subr.mxu0 0.0
    %77 = vmatpush1.msra.mxu0 0.0
    %78 = vmatprep.subr.mxu0 0.0
    %79 = vmatpush1.msra.mxu0 0.0
    %80 = vmatprep.subr.mxu0 0.0
    %81 = vmatpush1.msra.mxu0 0.0
    %82 = vmatprep.subr.mxu0 0.0
    %83 = vmatpush1.msra.mxu0 0.0
    %84 = vmatprep.subr.mxu0 0.0
    %85 = vmatpush1.msra.mxu0 0.0
    %86 = vmatprep.subr.mxu0 0.0
    %87 = vmatpush1.msra.mxu0 0.0
    %88 = vmatprep.subr.mxu0 0.0
    %89 = vmatpush1.msra.mxu0 0.0
    %90 = vmatprep.subr.mxu0 0.0
    %91 = vmatpush1.msra.mxu0 0.0
    %92 = vmatprep.subr.mxu0 0.0
    %93 = vmatpush1.msra.mxu0 0.0
    %94 = vmatprep.subr.mxu0 0.0
    %95 = vmatpush1.msra.mxu0 0.0
    %96 = vmatprep.subr.mxu0 0.0
    %97 = vmatpush1.msra.mxu0 0.0
    %98 = vmatprep.subr.mxu0 0.0
    %99 = vmatpush1.msra.mxu0 0.0
    %100 = vmatprep.subr.mxu0 0.0
    %101 = vmatpush1.msra.mxu0 0.0
    %102 = vmatprep.mubr.f32.mxu0 0.0
    %103 = vmatmul.mubr.f32.gmra.mrb[0].mxu0 %v36
    %v104 = vpop.f32.mrb[0].mxu0
    %v105 = vadd.f32 0.0, %v104
    %v106 = vpop.f32.mrb[0].mxu0
    %107 = vdwg.mxu0
    %v108 = vsub.f32 0.0, %v105
    %v109 = vmul.f32 %v108, 1.442695
    %v110 = vpow.pop %v109
    %s111 = sld [smem:[#allocation2]]
    %v112 = vld [vmem:[%s4] sm:$0x1]
    %vm113 = vcmask 130048
    %v115 = vsel %vm113, %v112, 0
    %v118 = vsel %vm113, %v110, 0
    %120 = vmatprep.subr.mxu0 0.0
    %121 = vmatpush1.xpose.msra.mxu0 %v118
    %122 = vmatprep.subr.mxu0 0.0
    %123 = vmatpush1.xpose.msra.mxu0 0.0
    %124 = vmatprep.subr.mxu0 0.0
    %125 = vmatpush1.xpose.msra.mxu0 0.0
    %126 = vmatprep.subr.mxu0 0.0
    %127 = vmatpush1.xpose.msra.mxu0 0.0
    %128 = vmatprep.subr.mxu0 0.0
    %129 = vmatpush1.xpose.msra.mxu0 0.0
    %130 = vmatprep.subr.mxu0 0.0
    %131 = vmatpush1.xpose.msra.mxu0 0.0
    %132 = vmatprep.subr.mxu0 0.0
    %133 = vmatpush1.xpose.msra.mxu0 0.0
    %134 = vmatprep.subr.mxu0 0.0
    %135 = vmatpush1.xpose.msra.mxu0 0.0
    %136 = vmatprep.subr.mxu0 0.0
    %137 = vmatpush1.xpose.msra.mxu0 0.0
    %138 = vmatprep.subr.mxu0 0.0
    %139 = vmatpush1.xpose.msra.mxu0 0.0
    %140 = vmatprep.subr.mxu0 0.0
    %141 = vmatpush1.xpose.msra.mxu0 0.0
    %142 = vmatprep.subr.mxu0 0.0
    %143 = vmatpush1.xpose.msra.mxu0 0.0
    %144 = vmatprep.subr.mxu0 0.0
    %145 = vmatpush1.xpose.msra.mxu0 0.0
    %146 = vmatprep.subr.mxu0 0.0
    %147 = vmatpush1.xpose.msra.mxu0 0.0
    %148 = vmatprep.subr.mxu0 0.0
    %149 = vmatpush1.xpose.msra.mxu0 0.0
    %150 = vmatprep.subr.mxu0 0.0
    %151 = vmatpush1.xpose.msra.mxu0 0.0
    %152 = vmatprep.subr.mxu0 0.0
    %153 = vmatpush1.xpose.msra.mxu0 0.0
    %154 = vmatprep.subr.mxu0 0.0
    %155 = vmatpush1.xpose.msra.mxu0 0.0
    %156 = vmatprep.subr.mxu0 0.0
    %157 = vmatpush1.xpose.msra.mxu0 0.0
    %158 = vmatprep.subr.mxu0 0.0
    %159 = vmatpush1.xpose.msra.mxu0 0.0
    %160 = vmatprep.subr.mxu0 0.0
    %161 = vmatpush1.xpose.msra.mxu0 0.0
    %162 = vmatprep.subr.mxu0 0.0
    %163 = vmatpush1.xpose.msra.mxu0 0.0
    %164 = vmatprep.subr.mxu0 0.0
    %165 = vmatpush1.xpose.msra.mxu0 0.0
    %166 = vmatprep.subr.mxu0 0.0
    %167 = vmatpush1.xpose.msra.mxu0 0.0
    %168 = vmatprep.subr.mxu0 0.0
    %169 = vmatpush1.xpose.msra.mxu0 0.0
    %170 = vmatprep.subr.mxu0 0.0
    %171 = vmatpush1.xpose.msra.mxu0 0.0
    %172 = vmatprep.subr.mxu0 0.0
    %173 = vmatpush1.xpose.msra.mxu0 0.0
    %174 = vmatprep.subr.mxu0 0.0
    %175 = vmatpush1.xpose.msra.mxu0 0.0
    %176 = vmatprep.subr.mxu0 0.0
    %177 = vmatpush1.xpose.msra.mxu0 0.0
    %178 = vmatprep.subr.mxu0 0.0
    %179 = vmatpush1.xpose.msra.mxu0 0.0
    %180 = vmatprep.subr.mxu0 0.0
    %181 = vmatpush1.xpose.msra.mxu0 0.0
    %182 = vmatprep.subr.mxu0 0.0
    %183 = vmatpush1.xpose.msra.mxu0 0.0
    %184 = vmatprep.mubr.f32.mxu0 0.0
    %185 = vmatmul.mubr.f32.gmra.mrb[0].mxu0 %v115
    %v186 = vpop.f32.mrb[0].mxu0
    %v187 = vadd.f32 0.0, %v186
    %v188 = vpop.f32.mrb[0].mxu0
    %189 = vdwg.mxu0
    %v190 = vstv %s111
    %v191 = vsub.f32 %v190, %v187
    %vm192 = vcmask 32768
    %193 = vst.msk [vmem:[#allocation3] sm:$0x1] %vm192, %v191
    // Predicated region
    $region22: #{tpu_custom_call.1} parent=1 // pred_check
      _
    $region23: #{tpu_custom_call.1} parent=1 // pred_check_branch
      %195 = sbr.rel (0) target = $region25
    $region24: #{tpu_custom_call.1} parent=1 // pred_region
      %s197 = ssub.s32 16, 16
      %198 = vsyncadd [#allocation4], %s197
      %s200 = sshll.u32 [#allocation3], 4
      %s201 = int_to_ptr.vmem [resolvable:$true] %s200
      %203 = dma.vmem_to_hbm [thread:$0]  %s201, 16, %s5, [#allocation4]
    $region25: #{tpu_custom_call.1} parent=1 // pred_fallthru
      _
    // Predicated region
    $region26: #{tpu_custom_call.1} parent=1 // pred_check
      _
    $region27: #{tpu_custom_call.1} parent=1 // pred_check_branch
      %205 = sbr.rel (0) target = $region29
    $region28: #{tpu_custom_call.1} parent=1 // pred_region
      %206 = dma.done [#allocation4], 16
    $region29: #{tpu_custom_call.1} parent=1 // pred_fallthru
      _
    %207 = vsyncpa [#allocation4], 1

</llo_original>
